<compile_context>
chip_gen: v7x
topology: tpu7x:2x2x1
jax: 0.10.0
libtpu: 0.0.40
codegen_flags: <defaults>
</compile_context>

<pallas_src>
import functools

import jax
import jax.numpy as jnp
from jax.experimental import pallas as pl
from jax.experimental.pallas import tpu as pltpu


def _gin_fused_kernel(eps_ref, a_ref, x_ref, noise_ref, w0x_ref, w0n_ref,
                      b0_ref, *rest, L):
    """Fused GIN forward: all layers, all samples, one invocation.

    eps_ref  : SMEM (L,) f32 — learnable GIN eps per layer.
    a_ref    : VMEM (N, N) adjacency (eps self-term handled on the VPU).
    x_ref    : VMEM (N, Din) node features (shared by all samples).
    noise_ref: VMEM (N, S*Dnoise) — sample axis folded into lanes
               (column block s == epsilon[s]).
    w0x_ref  : VMEM (Din, S*D0)  — X-rows of W0, column-tiled S times.
    w0n_ref  : VMEM (S*Dn, S*D0) — noise-rows of W0, block-diagonal.
    b0_ref   : VMEM (1, S*D0)    — layer-0 bias, column-tiled S times.
    rest     : (W_bd_1, b_1, ..., W_bd_{L-1}, b_{L-1}, out_ref); the last
               layer's weight/bias are zero-padded to a 128-multiple of lanes
               so the output store is lane-dense.
    """
    out_ref = rest[-1]
    layer_refs = rest[:-1]

    a = a_ref[...]

    # ---- Layer 0 -----------------------------------------------------------
    one_plus_eps0 = 1.0 + eps_ref[0]
    x = x_ref[...]
    nz = noise_ref[...]
    # Sample-invariant X aggregation: computed once on (N, Din).
    x_agg = one_plus_eps0 * x + jnp.dot(a, x, preferred_element_type=jnp.float32)
    # All-sample noise aggregation: one (N,N)@(N,S*Dn) matmul, no zero blocks.
    n_agg = one_plus_eps0 * nz + jnp.dot(a, nz, preferred_element_type=jnp.float32)
    h = (jnp.dot(x_agg, w0x_ref[...], preferred_element_type=jnp.float32)
         + jnp.dot(n_agg, w0n_ref[...], preferred_element_type=jnp.float32)
         + b0_ref[...])
    h = jnp.maximum(h, 0.0)

    # ---- Layers 1 .. L-1 (statically unrolled; h never leaves VMEM/vregs) ---
    for l in range(1, L):
        w_ref = layer_refs[2 * (l - 1)]
        b_ref = layer_refs[2 * (l - 1) + 1]
        # Self-term is a VPU FMA; aggregation is one (N,N)@(N,S*D_l) matmul.
        z = (1.0 + eps_ref[l]) * h + jnp.dot(
            a, h, preferred_element_type=jnp.float32)
        h = jnp.maximum(
            jnp.dot(z, w_ref[...], preferred_element_type=jnp.float32)
            + b_ref[...],
            0.0)

    out_ref[...] = h          # full-lane-width, unmasked store


def _round_up(x, m):
    return ((x + m - 1) // m) * m


@jax.jit
def gin_forward(A, X, epsilon, eps_vec, weights, biases):
    """Fused GINWithNoise forward.

    A: (N, N)   X: (1, N, Din)   epsilon: (S, N, Dnoise)
    eps_vec: (L,) learnable GIN eps (init 0)
    weights[l]: (D_l, D_{l+1})   biases[l]: (1, D_{l+1})
    Returns (S, N, output_dims[-1]).
    """
    S, N, noise_dim = epsilon.shape
    L = len(weights)
    din = X.shape[-1]
    d_last = weights[-1].shape[1]
    lane_out = _round_up(S * d_last, 128)

    f32 = jnp.float32
    A = A.astype(f32)
    x2d = X.reshape(N, din).astype(f32)
    # Fold the sample axis into the lane axis: column block s <- epsilon[s].
    noise2d = epsilon.astype(f32).transpose(1, 0, 2).reshape(N, S * noise_dim)

    eye_s = jnp.eye(S, dtype=f32)

    def pad_lanes(w, width):
        return jnp.pad(w, ((0, 0), (0, width - w.shape[1])))

    # Layer 0: split W0 into X-rows / noise-rows so concat([X | eps]) is never
    # materialized; tile / block-diagonalize for the lane-folded sample axis.
    w0 = weights[0].astype(f32)
    w0x = jnp.tile(w0[:din], (1, S))                   # (Din, S*D0)
    w0n = jnp.kron(eye_s, w0[din:])                    # (S*Dn, S*D0)
    b0 = jnp.tile(biases[0].astype(f32), (1, S))       # (1, S*D0)
    if L == 1:
        w0x = pad_lanes(w0x, lane_out)
        w0n = pad_lanes(w0n, lane_out)
        b0 = pad_lanes(b0, lane_out)

    inputs = [eps_vec.astype(f32), A, x2d, noise2d, w0x, w0n, b0]
    for l in range(1, L):
        w_bd = jnp.kron(eye_s, weights[l].astype(f32))   # (S*D_l, S*D_{l+1})
        b_bd = jnp.tile(biases[l].astype(f32), (1, S))   # (1, S*D_{l+1})
        if l == L - 1:
            w_bd = pad_lanes(w_bd, lane_out)             # lane-dense output
            b_bd = pad_lanes(b_bd, lane_out)
        inputs.append(w_bd)
        inputs.append(b_bd)

    in_specs = [pl.BlockSpec(memory_space=pltpu.MemorySpace.SMEM)]   # eps_vec
    in_specs += [pl.BlockSpec(memory_space=pltpu.MemorySpace.VMEM)
                 for _ in range(len(inputs) - 1)]

    # No grid: one invocation, whole arrays resident in VMEM, single-buffered.
    # (For large N: add a "parallel" row-tile grid over h + an "arbitrary"
    # contraction tile of A and set vmem_limit_bytes — see module docstring.)
    out2d = pl.pallas_call(
        functools.partial(_gin_fused_kernel, L=L),
        out_shape=jax.ShapeDtypeStruct((N, lane_out), f32),
        in_specs=in_specs,
        out_specs=pl.BlockSpec(memory_space=pltpu.MemorySpace.VMEM),
    )(*inputs)

    # Undo the lane folding: (N, lane_out) -> (S, N, d_last).  The final
    # self.activation(outputTensor) (ReLU) is idempotent with the last layer's
    # in-kernel ReLU, so no extra elementwise pass is needed.
    out = out2d[:, :S * d_last].reshape(N, S, d_last).transpose(1, 0, 2)
    return out


class GINWithNoisePallas:
    """Deterministic, synthetic-weight re-implementation of GINWithNoise."""

    def __init__(self, L, input_dim, output_dims, noise_dim, sample_size, key):
        if len(output_dims) != L:
            raise Exception("number of layer not matched to output dimensions")
        self.L = L
        self.input_dim = input_dim
        self.output_dims = list(output_dims)
        self.noise_dim = noise_dim
        self.sample_size = sample_size
        # GIN eps (learn_eps=True, init 0) kept as a runtime jnp value; it is
        # read from SMEM inside the kernel (differentiable, no recompile).
        self.eps = jnp.zeros((L,), jnp.float32)
        # nn.Linear-style params per layer (deterministic init).
        dims = [input_dim + noise_dim] + list(output_dims)
        weights, biases = [], []
        for i in range(L):
            key, kw, kb = jax.random.split(key, 3)
            bound = 1.0 / (dims[i] ** 0.5)
            weights.append(jax.random.uniform(
                kw, (dims[i], dims[i + 1]), minval=-bound, maxval=bound,
                dtype=jnp.float32))
            biases.append(jax.random.uniform(
                kb, (1, dims[i + 1]), minval=-bound, maxval=bound,
                dtype=jnp.float32))
        self.weights = tuple(weights)
        self.biases = tuple(biases)

    def __call__(self, A, X, key):
        if X.ndim != 3:
            raise Exception("dimension of input feature matrix is not 2")
        S = self.sample_size
        N = X.shape[1]
        # Bernoulli(0.5) noise, matching torch.distributions.Bernoulli sampling.
        epsilon = jax.random.bernoulli(
            key, 0.5, (S, N, self.noise_dim)).astype(jnp.float32)
        out = gin_forward(A, X.astype(jnp.float32), epsilon, self.eps,
                          self.weights, self.biases)
        return out, epsilon


def _reference_forward(A, X, epsilon, eps_vec, weights, biases):
    """Pure-JAX reference following the original per-sample/per-layer loops."""
    S, N, _ = epsilon.shape
    feat = jnp.broadcast_to(X, (S, N, X.shape[-1])).astype(jnp.float32)
    h = jnp.concatenate([feat, epsilon], axis=-1)
    hp = jax.lax.Precision.HIGHEST
    outs = []
    for s in range(S):
        hs = h[s]
        for l in range(len(weights)):
            agg = jnp.dot(A, hs, precision=hp)
            hs = jnp.maximum(
                jnp.dot((1.0 + eps_vec[l]) * hs + agg, weights[l], precision=hp)
                + biases[l], 0.0)
        outs.append(hs)
    out = jnp.stack(outs, axis=0)
    return jnp.maximum(out, 0.0)


if __name__ == "__main__":
    # Small shapes consistent with the module.
    L = 2
    input_dim = 8
    noise_dim = 4
    output_dims = [16, 8]
    sample_size = 3
    N = 16

    key = jax.random.PRNGKey(0)
    k_model, k_adj, k_x, k_noise = jax.random.split(key, 4)

    model = GINWithNoisePallas(L, input_dim, output_dims, noise_dim,
                               sample_size, k_model)

    # Symmetric 0/1 adjacency without self-loops.
    upper = jax.random.bernoulli(k_adj, 0.3, (N, N)).astype(jnp.float32)
    A = jnp.triu(upper, k=1)
    A = A + A.T

    X = jax.random.normal(k_x, (1, N, input_dim), dtype=jnp.float32)

    out, epsilon = model(A, X, k_noise)
    out = jax.block_until_ready(out)
    epsilon = jax.block_until_ready(epsilon)

    assert out.shape == (sample_size, N, output_dims[-1])
    assert epsilon.shape == (sample_size, N, noise_dim)

    ref = _reference_forward(A, X, epsilon, model.eps, model.weights, model.biases)
    assert bool(jnp.allclose(out, ref, rtol=1e-2, atol=1e-2)), "mismatch vs reference"

    print("KERNEL_OK")
</pallas_src>

<mosaic_0001>
module attributes {stable_mosaic.version = 11 : i64} {
  func.func @_gin_fused_kernel(%arg0: memref<2xf32, #tpu.memory_space<smem>>, %arg1: memref<16x16xf32, #tpu.memory_space<vmem>>, %arg2: memref<16x8xf32, #tpu.memory_space<vmem>>, %arg3: memref<16x12xf32, #tpu.memory_space<vmem>>, %arg4: memref<8x48xf32, #tpu.memory_space<vmem>>, %arg5: memref<12x48xf32, #tpu.memory_space<vmem>>, %arg6: memref<1x48xf32, #tpu.memory_space<vmem>>, %arg7: memref<48x128xf32, #tpu.memory_space<vmem>>, %arg8: memref<1x128xf32, #tpu.memory_space<vmem>>, %arg9: memref<16x128xf32, #tpu.memory_space<vmem>>) attributes {dimension_semantics = [], scalar_prefetch = 0 : i64, scratch_operands = 0 : i64, tpu.core_type = #tpu.core_type<tc>} {
    %c0 = arith.constant 0 : index
    %c0_0 = arith.constant 0 : index
    %0 = vector.load %arg1[%c0, %c0_0] : memref<16x16xf32, #tpu.memory_space<vmem>>, vector<16x16xf32>
    %c0_1 = arith.constant 0 : index
    %1 = memref.load %arg0[%c0_1] : memref<2xf32, #tpu.memory_space<smem>>
    %cst = arith.constant 1.000000e+00 : f32
    %2 = arith.addf %cst, %1 : f32
    %c0_2 = arith.constant 0 : index
    %c0_3 = arith.constant 0 : index
    %3 = vector.load %arg2[%c0_2, %c0_3] : memref<16x8xf32, #tpu.memory_space<vmem>>, vector<16x8xf32>
    %c0_4 = arith.constant 0 : index
    %c0_5 = arith.constant 0 : index
    %4 = vector.load %arg3[%c0_4, %c0_5] : memref<16x12xf32, #tpu.memory_space<vmem>>, vector<16x12xf32>
    %5 = vector.broadcast %2 : f32 to vector<16x8xf32>
    %6 = arith.mulf %5, %3 : vector<16x8xf32>
    %cst_6 = arith.constant dense<0.000000e+00> : vector<16x8xf32>
    %7 = tpu.matmul %0, %3, %cst_6 {dimension_numbers = #tpu.dot_dimension_numbers<[1], [0], [0], [1], [0, 0, 1, 1], [], []>} : vector<16x16xf32>, vector<16x8xf32>, vector<16x8xf32> -> vector<16x8xf32>
    %8 = arith.addf %6, %7 : vector<16x8xf32>
    %9 = vector.broadcast %2 : f32 to vector<16x12xf32>
    %10 = arith.mulf %9, %4 : vector<16x12xf32>
    %cst_7 = arith.constant dense<0.000000e+00> : vector<16x12xf32>
    %11 = tpu.matmul %0, %4, %cst_7 {dimension_numbers = #tpu.dot_dimension_numbers<[1], [0], [0], [1], [0, 0, 1, 1], [], []>} : vector<16x16xf32>, vector<16x12xf32>, vector<16x12xf32> -> vector<16x12xf32>
    %12 = arith.addf %10, %11 : vector<16x12xf32>
    %c0_8 = arith.constant 0 : index
    %c0_9 = arith.constant 0 : index
    %13 = vector.load %arg4[%c0_8, %c0_9] : memref<8x48xf32, #tpu.memory_space<vmem>>, vector<8x48xf32>
    %cst_10 = arith.constant dense<0.000000e+00> : vector<16x48xf32>
    %14 = tpu.matmul %8, %13, %cst_10 {dimension_numbers = #tpu.dot_dimension_numbers<[1], [0], [0], [1], [0, 0, 1, 1], [], []>} : vector<16x8xf32>, vector<8x48xf32>, vector<16x48xf32> -> vector<16x48xf32>
    %c0_11 = arith.constant 0 : index
    %c0_12 = arith.constant 0 : index
    %15 = vector.load %arg5[%c0_11, %c0_12] : memref<12x48xf32, #tpu.memory_space<vmem>>, vector<12x48xf32>
    %cst_13 = arith.constant dense<0.000000e+00> : vector<16x48xf32>
    %16 = tpu.matmul %12, %15, %cst_13 {dimension_numbers = #tpu.dot_dimension_numbers<[1], [0], [0], [1], [0, 0, 1, 1], [], []>} : vector<16x12xf32>, vector<12x48xf32>, vector<16x48xf32> -> vector<16x48xf32>
    %17 = arith.addf %14, %16 : vector<16x48xf32>
    %c0_14 = arith.constant 0 : index
    %c0_15 = arith.constant 0 : index
    %18 = vector.load %arg6[%c0_14, %c0_15] : memref<1x48xf32, #tpu.memory_space<vmem>>, vector<1x48xf32>
    %19 = vector.broadcast %18 : vector<1x48xf32> to vector<16x48xf32>
    %20 = arith.addf %17, %19 : vector<16x48xf32>
    %cst_16 = arith.constant 0.000000e+00 : f32
    %21 = vector.broadcast %cst_16 : f32 to vector<16x48xf32>
    %22 = arith.maximumf %20, %21 : vector<16x48xf32>
    %c1 = arith.constant 1 : index
    %23 = memref.load %arg0[%c1] : memref<2xf32, #tpu.memory_space<smem>>
    %cst_17 = arith.constant 1.000000e+00 : f32
    %24 = arith.addf %cst_17, %23 : f32
    %25 = vector.broadcast %24 : f32 to vector<16x48xf32>
    %26 = arith.mulf %25, %22 : vector<16x48xf32>
    %cst_18 = arith.constant dense<0.000000e+00> : vector<16x48xf32>
    %27 = tpu.matmul %0, %22, %cst_18 {dimension_numbers = #tpu.dot_dimension_numbers<[1], [0], [0], [1], [0, 0, 1, 1], [], []>} : vector<16x16xf32>, vector<16x48xf32>, vector<16x48xf32> -> vector<16x48xf32>
    %28 = arith.addf %26, %27 : vector<16x48xf32>
    %c0_19 = arith.constant 0 : index
    %c0_20 = arith.constant 0 : index
    %29 = vector.load %arg7[%c0_19, %c0_20] : memref<48x128xf32, #tpu.memory_space<vmem>>, vector<48x128xf32>
    %cst_21 = arith.constant dense<0.000000e+00> : vector<16x128xf32>
    %30 = tpu.matmul %28, %29, %cst_21 {dimension_numbers = #tpu.dot_dimension_numbers<[1], [0], [0], [1], [0, 0, 1, 1], [], []>} : vector<16x48xf32>, vector<48x128xf32>, vector<16x128xf32> -> vector<16x128xf32>
    %c0_22 = arith.constant 0 : index
    %c0_23 = arith.constant 0 : index
    %31 = vector.load %arg8[%c0_22, %c0_23] : memref<1x128xf32, #tpu.memory_space<vmem>>, vector<1x128xf32>
    %32 = vector.broadcast %31 : vector<1x128xf32> to vector<16x128xf32>
    %33 = arith.addf %30, %32 : vector<16x128xf32>
    %cst_24 = arith.constant 0.000000e+00 : f32
    %34 = vector.broadcast %cst_24 : f32 to vector<16x128xf32>
    %35 = arith.maximumf %33, %34 : vector<16x128xf32>
    %c0_25 = arith.constant 0 : index
    %c0_26 = arith.constant 0 : index
    %36 = vector.load %arg9[%c0_25, %c0_26] : memref<16x128xf32, #tpu.memory_space<vmem>>, vector<16x128xf32>
    tpu.vector_store %arg9[%c0_25, %c0_26], %35 {strides = array<i32>} : memref<16x128xf32, #tpu.memory_space<vmem>>, vector<16x128xf32>,
    return
  }
}

</mosaic_0001>

<llo_original>
// kernel: tile.19
$region0: #{tile.19}
  %s0 = inlined_call_operand.vmem [shape: f32[8,3,16], index: 0, kind: input, shape index: {}]
  %s1 = inlined_call_operand.vmem [shape: f32[8,48], index: 1, kind: output, shape index: {}]
  $region1: #{tile.19} parent=0
    #allocation0 [shape = 'u8[32768]{0}', space=vmem, size = 0x8000, scoped, tag = 'scoped mem for input reshape']
    %s3 = sshllo.u32 0, 4
    %s4 = smul.addr 4, 7
    %s5 = scalar_lea.vmem %s0, %s4
    %v6 = vld [vmem:[%s5] sm:%s3]
    %s7 = scalar_lea.vmem [#allocation0], 56
    %8 = vst [vmem:[%s7] sm:%s3] %v6
    %s9 = smul.addr 4, 6
    %s10 = scalar_lea.vmem %s0, %s9
    %v11 = vld [vmem:[%s10] sm:%s3]
    %s12 = scalar_lea.vmem [#allocation0], 48
    %13 = vst [vmem:[%s12] sm:%s3] %v11
    %s14 = smul.addr 4, 5
    %s15 = scalar_lea.vmem %s0, %s14
    %v16 = vld [vmem:[%s15] sm:%s3]
    %s17 = scalar_lea.vmem [#allocation0], 40
    %18 = vst [vmem:[%s17] sm:%s3] %v16
    %s19 = smul.addr 4, 4
    %s20 = scalar_lea.vmem %s0, %s19
    %v21 = vld [vmem:[%s20] sm:%s3]
    %s22 = scalar_lea.vmem [#allocation0], 32
    %23 = vst [vmem:[%s22] sm:%s3] %v21
    %s24 = smul.addr 4, 3
    %s25 = scalar_lea.vmem %s0, %s24
    %v26 = vld [vmem:[%s25] sm:%s3]
    %s27 = scalar_lea.vmem [#allocation0], 24
    %28 = vst [vmem:[%s27] sm:%s3] %v26
    %s29 = smul.addr 4, 2
    %s30 = scalar_lea.vmem %s0, %s29
    %v31 = vld [vmem:[%s30] sm:%s3]
    %s32 = scalar_lea.vmem [#allocation0], 16
    %33 = vst [vmem:[%s32] sm:%s3] %v31
    %s34 = scalar_lea.vmem %s0, 4
    %v35 = vld [vmem:[%s34] sm:%s3]
    %s36 = scalar_lea.vmem [#allocation0], 8
    %37 = vst [vmem:[%s36] sm:%s3] %v35
    %v38 = vld [vmem:[%s0] sm:%s3]
    %39 = vst [vmem:[#allocation0] sm:%s3] %v38
    %v40 = vld [vmem:[#allocation0] ss:$8 sm:$0xf]
    %v41 = vld [vmem:[#allocation0] ss:$8 sm:$0xf0]
    %vm42 = vcmask 1047556
    %v43 = vsel %vm42, %v41, %v40
    %vm44 = vcmask 130048
    %45 = vst.msk [vmem:[%s1] sm:$0xff] %vm44, %v43
    %s46 = scalar_lea.vmem [#allocation0], 2
    %v47 = vld [vmem:[%s46] ss:$8 sm:$0xf]
    %s48 = scalar_lea.vmem [#allocation0], 2
    %v49 = vld [vmem:[%s48] ss:$8 sm:$0xf0]
    %vm50 = vcmask 1047556
    %v51 = vsel %vm50, %v49, %v47
    %52 = vrot.lane.b32.xlu0 %v51, 32
    %v53 = vpop.permute.xlu0 %52
    %vm54 = vcmask 392448
    %55 = vst.msk [vmem:[%s1] sm:$0xff] %vm54, %v53
    %s56 = scalar_lea.vmem [#allocation0], 1
    %v57 = vld [vmem:[%s56] ss:$8 sm:$0xf]
    %s58 = scalar_lea.vmem [#allocation0], 1
    %v59 = vld [vmem:[%s58] ss:$8 sm:$0xf0]
    %vm60 = vcmask 1047556
    %v61 = vsel %vm60, %v59, %v57
    %62 = vrot.lane.b32.xlu0 %v61, 16
    %v63 = vpop.permute.xlu0 %62
    %vm64 = vcmask 261248
    %65 = vst.msk [vmem:[%s1] sm:$0xff] %vm64, %v63

// kernel: gin_forward.1
$region0: #{gin_forward.1}
  #allocation0 [shape = 'u32[]', space=smem, size = 0x4, offset = 0x4, fixed_abs, tag = 'smem constant byte address 0x4 - core index']
  #allocation1 [shape = 'u32[144,128]{1,0:T(1,128)}', space=vmem, size = 0x12000, scoped, tag = 'internal scratch']
  %s0 = inlined_call_operand.vmem [shape: f32[2], index: 0, kind: input, shape index: {}]
  %s1 = inlined_call_operand.vmem [shape: f32[16,16], index: 1, kind: input, shape index: {}]
  %s2 = inlined_call_operand.vmem [shape: f32[16,8], index: 2, kind: input, shape index: {}]
  %s3 = inlined_call_operand.vmem [shape: f32[16,12], index: 3, kind: input, shape index: {}]
  %s4 = inlined_call_operand.vmem [shape: f32[8,48], index: 4, kind: input, shape index: {}]
  %s5 = inlined_call_operand.vmem [shape: f32[12,48], index: 5, kind: input, shape index: {}]
  %s6 = inlined_call_operand.vmem [shape: f32[1,48], index: 6, kind: input, shape index: {}]
  %s7 = inlined_call_operand.vmem [shape: f32[48,128], index: 7, kind: input, shape index: {}]
  %s8 = inlined_call_operand.vmem [shape: f32[1,128], index: 8, kind: input, shape index: {}]
  %s9 = inlined_call_operand.vmem [shape: f32[16,128], index: 9, kind: output, shape index: {}]
  %s10 = sld [smem:[#allocation0]]
  $region50: #{gin_forward.1} parent=0
    _
  %s12 = ssub.s32 1, %s10
  %s13 = scalar_select 0, %s12, %s10
  $region1: #{gin_forward.1} parent=0
    #allocation2 [shape = 'u8[512]{0}', space=smem, size = 0x200, scoped, tag = 'input window, operand 0, single buffered']
    #allocation3 [shape = 's32[1]{0}', space=sflag, size = 0x4, scoped, tag = 'scoped memory for gin_forward.1']
    %14 = vsyncpa [#allocation3], 0
    // Predicated region
    $region2: #{gin_forward.1} parent=1 // pred_check
      _
    $region3: #{gin_forward.1} parent=1 // pred_check_branch
      %16 = sbr.rel (0) target = $region5
    $region4: #{gin_forward.1} parent=1 // pred_region
      %s18 = ssub.s32 16, 16
      %19 = vsyncadd [#allocation3], %s18
      %s21 = sshll.u32 %s0, 4
      %s22 = int_to_ptr.vmem [resolvable:$true] %s21
      %24 = dma.vmem_to_smem %s22, 16, [#allocation2], [#allocation3]
    $region5: #{gin_forward.1} parent=1 // pred_fallthru
      _
    // Predicated region
    $region6: #{gin_forward.1} parent=1 // pred_check
      _
    $region7: #{gin_forward.1} parent=1 // pred_check_branch
      %26 = sbr.rel (0) target = $region9
    $region8: #{gin_forward.1} parent=1 // pred_region
      _
    $region9: #{gin_forward.1} parent=1 // pred_fallthru
      _
    // Predicated region
    $region10: #{gin_forward.1} parent=1 // pred_check
      _
    $region11: #{gin_forward.1} parent=1 // pred_check_branch
      %28 = sbr.rel (0) target = $region13
    $region12: #{gin_forward.1} parent=1 // pred_region
      _
    $region13: #{gin_forward.1} parent=1 // pred_fallthru
      _
    // Predicated region
    $region14: #{gin_forward.1} parent=1 // pred_check
      _
    $region15: #{gin_forward.1} parent=1 // pred_check_branch
      %30 = sbr.rel (0) target = $region17
    $region16: #{gin_forward.1} parent=1 // pred_region
      _
    $region17: #{gin_forward.1} parent=1 // pred_fallthru
      _
    // Predicated region
    $region18: #{gin_forward.1} parent=1 // pred_check
      _
    $region19: #{gin_forward.1} parent=1 // pred_check_branch
      %32 = sbr.rel (0) target = $region21
    $region20: #{gin_forward.1} parent=1 // pred_region
      _
    $region21: #{gin_forward.1} parent=1 // pred_fallthru
      _
    // Predicated region
    $region22: #{gin_forward.1} parent=1 // pred_check
      _
    $region23: #{gin_forward.1} parent=1 // pred_check_branch
      %34 = sbr.rel (0) target = $region25
    $region24: #{gin_forward.1} parent=1 // pred_region
      _
    $region25: #{gin_forward.1} parent=1 // pred_fallthru
      _
    // Predicated region
    $region26: #{gin_forward.1} parent=1 // pred_check
      _
    $region27: #{gin_forward.1} parent=1 // pred_check_branch
      %36 = sbr.rel (0) target = $region29
    $region28: #{gin_forward.1} parent=1 // pred_region
      _
    $region29: #{gin_forward.1} parent=1 // pred_fallthru
      _
    // Predicated region
    $region30: #{gin_forward.1} parent=1 // pred_check
      _
    $region31: #{gin_forward.1} parent=1 // pred_check_branch
      %38 = sbr.rel (0) target = $region33
    $region32: #{gin_forward.1} parent=1 // pred_region
      _
    $region33: #{gin_forward.1} parent=1 // pred_fallthru
      _
    // Predicated region
    $region34: #{gin_forward.1} parent=1 // pred_check
      _
    $region35: #{gin_forward.1} parent=1 // pred_check_branch
      %40 = sbr.rel (0) target = $region37
    $region36: #{gin_forward.1} parent=1 // pred_region
      _
    $region37: #{gin_forward.1} parent=1 // pred_fallthru
      _
    // Predicated region
    $region38: #{gin_forward.1} parent=1 // pred_check
      _
    $region39: #{gin_forward.1} parent=1 // pred_check_branch
      %42 = sbr.rel (0) target = $region41
    $region40: #{gin_forward.1} parent=1 // pred_region
      %43 = dma.done [#allocation3], 16
    $region41: #{gin_forward.1} parent=1 // pred_fallthru
      _
    %44 = sfence
    %v45 = vld [vmem:[%s1] sm:$0xff]
    %v46 = vld [vmem:[%s1 + $0x8] sm:$0xff]
    %s47 = sld [smem:[#allocation2]]
    %s48 = sadd.f32 %s47, 1.0
    %v49 = vld [vmem:[%s2] sm:$0xff]
    %v50 = vld [vmem:[%s2 + $0x8] sm:$0xff]
    %v51 = vld [vmem:[%s3] sm:$0xff]
    %v52 = vld [vmem:[%s3 + $0x8] sm:$0xff]
    %v53 = vstv %s48
    %v54 = vmul.f32 %v53, %v49
    %v55 = vmul.f32 %v53, %v50
    %vm56 = vcmask 130048
    %v58 = vsel %vm56, %v45, 0
    %v61 = vsel %vm56, %v46, 0
    %63 = vmatprep.subr.mxu0 0.0
    %64 = vmatpush1.msra.mxu0 %v49
    %65 = vmatprep.subr.mxu0 0.0
    %66 = vmatpush1.msra.mxu0 %v50
    %67 = vmatprep.subr.mxu0 0.0
    %68 = vmatpush1.msra.mxu0 0.0
    %69 = vmatprep.subr.mxu0 0.0
    %70 = vmatpush1.msra.mxu0 0.0
    %71 = vmatprep.subr.mxu0 0.0
    %72 = vmatpush1.msra.mxu0 0.0
    %73 = vmatprep.subr.mxu0 0.0
    %74 = vmatpush1.msra.mxu0 0.0
    %75 = vmatprep.subr.mxu0 0.0
    %76 = vmatpush1.msra.mxu0 0.0
    %77 = vmatprep.subr.mxu0 0.0
    %78 = vmatpush1.msra.mxu0 0.0
    %79 = vmatprep.subr.mxu0 0.0
    %80 = vmatpush1.msra.mxu0 0.0
    %81 = vmatprep.subr.mxu0 0.0
    %82 = vmatpush1.msra.mxu0 0.0
    %83 = vmatprep.subr.mxu0 0.0
    %84 = vmatpush1.msra.mxu0 0.0
    %85 = vmatprep.subr.mxu0 0.0
    %86 = vmatpush1.msra.mxu0 0.0
    %87 = vmatprep.subr.mxu0 0.0
    %88 = vmatpush1.msra.mxu0 0.0
    %89 = vmatprep.subr.mxu0 0.0
    %90 = vmatpush1.msra.mxu0 0.0
    %91 = vmatprep.subr.mxu0 0.0
    %92 = vmatpush1.msra.mxu0 0.0
    %93 = vmatprep.subr.mxu0 0.0
    %94 = vmatpush1.msra.mxu0 0.0
    %95 = vmatprep.subr.mxu0 0.0
    %96 = vmatpush1.msra.mxu0 0.0
    %97 = vmatprep.subr.mxu0 0.0
    %98 = vmatpush1.msra.mxu0 0.0
    %99 = vmatprep.subr.mxu0 0.0
    %100 = vmatpush1.msra.mxu0 0.0
    %101 = vmatprep.subr.mxu0 0.0
    %102 = vmatpush1.msra.mxu0 0.0
    %103 = vmatprep.subr.mxu0 0.0
    %104 = vmatpush1.msra.mxu0 0.0
    %105 = vmatprep.subr.mxu0 0.0
    %106 = vmatpush1.msra.mxu0 0.0
    %107 = vmatprep.subr.mxu0 0.0
    %108 = vmatpush1.msra.mxu0 0.0
    %109 = vmatprep.subr.mxu0 0.0
    %110 = vmatpush1.msra.mxu0 0.0
    %111 = vmatprep.subr.mxu0 0.0
    %112 = vmatpush1.msra.mxu0 0.0
    %113 = vmatprep.subr.mxu0 0.0
    %114 = vmatpush1.msra.mxu0 0.0
    %115 = vmatprep.subr.mxu0 0.0
    %116 = vmatpush1.msra.mxu0 0.0
    %117 = vmatprep.subr.mxu0 0.0
    %118 = vmatpush1.msra.mxu0 0.0
    %119 = vmatprep.subr.mxu0 0.0
    %120 = vmatpush1.msra.mxu0 0.0
    %121 = vmatprep.subr.mxu0 0.0
    %122 = vmatpush1.msra.mxu0 0.0
    %123 = vmatprep.subr.mxu0 0.0
    %124 = vmatpush1.msra.mxu0 0.0
    %125 = vmatprep.subr.mxu0 0.0
    %126 = vmatpush1.msra.mxu0 0.0
    %127 = vmatprep.mubr.f32.mxu0 0.0
    %128 = vmatmul.mubr.f32.gmra.mrb[0].mxu0 %v58
    %v129 = vpop.f32.mrb[0].mxu0
    %v130 = vadd.f32 0.0, %v129
    %v131 = vpop.f32.mrb[0].mxu0
    %132 = vmatprep.mubr.f32.mxu0 0.0
    %133 = vmatmul.mubr.f32.gmra.mrb[0].mxu0 %v61
    %v134 = vpop.f32.mrb[0].mxu0
    %v135 = vadd.f32 0.0, %v134
    %v136 = vpop.f32.mrb[0].mxu0
    %137 = vdwg.mxu0
    %v138 = vadd.f32 %v54, %v130
    %v139 = vadd.f32 %v55, %v135
    %v140 = vmul.f32 %v53, %v51
    %v141 = vmul.f32 %v53, %v52
    %142 = vmatprep.subr.mxu0 0.0
    %143 = vmatpush1.msra.mxu0 %v51
    %144 = vmatprep.subr.mxu0 0.0
    %145 = vmatpush1.msra.mxu0 %v52
    %146 = vmatprep.subr.mxu0 0.0
    %147 = vmatpush1.msra.mxu0 0.0
    %148 = vmatprep.subr.mxu0 0.0
    %149 = vmatpush1.msra.mxu0 0.0
    %150 = vmatprep.subr.mxu0 0.0
    %151 = vmatpush1.msra.mxu0 0.0
    %152 = vmatprep.subr.mxu0 0.0
    %153 = vmatpush1.msra.mxu0 0.0
    %154 = vmatprep.subr.mxu0 0.0
    %155 = vmatpush1.msra.mxu0 0.0
    %156 = vmatprep.subr.mxu0 0.0
    %157 = vmatpush1.msra.mxu0 0.0
    %158 = vmatprep.subr.mxu0 0.0
    %159 = vmatpush1.msra.mxu0 0.0
    %160 = vmatprep.subr.mxu0 0.0
    %161 = vmatpush1.msra.mxu0 0.0
    %162 = vmatprep.subr.mxu0 0.0
    %163 = vmatpush1.msra.mxu0 0.0
    %164 = vmatprep.subr.mxu0 0.0
    %165 = vmatpush1.msra.mxu0 0.0
    %166 = vmatprep.subr.mxu0 0.0
    %167 = vmatpush1.msra.mxu0 0.0
    %168 = vmatprep.subr.mxu0 0.0
    %169 = vmatpush1.msra.mxu0 0.0
    %170 = vmatprep.subr.mxu0 0.0
    %171 = vmatpush1.msra.mxu0 0.0
    %172 = vmatprep.subr.mxu0 0.0
    %173 = vmatpush1.msra.mxu0 0.0
    %174 = vmatprep.subr.mxu0 0.0
    %175 = vmatpush1.msra.mxu0 0.0
    %176 = vmatprep.subr.mxu0 0.0
    %177 = vmatpush1.msra.mxu0 0.0
    %178 = vmatprep.subr.mxu0 0.0
    %179 = vmatpush1.msra.mxu0 0.0
    %180 = vmatprep.subr.mxu0 0.0
    %181 = vmatpush1.msra.mxu0 0.0
    %182 = vmatprep.subr.mxu0 0.0
    %183 = vmatpush1.msra.mxu0 0.0
    %184 = vmatprep.subr.mxu0 0.0
    %185 = vmatpush1.msra.mxu0 0.0
    %186 = vmatprep.subr.mxu0 0.0
    %187 = vmatpush1.msra.mxu0 0.0
    %188 = vmatprep.subr.mxu0 0.0
    %189 = vmatpush1.msra.mxu0 0.0
    %190 = vmatprep.subr.mxu0 0.0
    %191 = vmatpush1.msra.mxu0 0.0
    %192 = vmatprep.subr.mxu0 0.0
    %193 = vmatpush1.msra.mxu0 0.0
    %194 = vmatprep.subr.mxu0 0.0
    %195 = vmatpush1.msra.mxu0 0.0
    %196 = vmatprep.subr.mxu0 0.0
    %197 = vmatpush1.msra.mxu0 0.0
    %198 = vmatprep.subr.mxu0 0.0
    %199 = vmatpush1.msra.mxu0 0.0
    %200 = vmatprep.subr.mxu0 0.0
    %201 = vmatpush1.msra.mxu0 0.0
    %202 = vmatprep.subr.mxu0 0.0
    %203 = vmatpush1.msra.mxu0 0.0
    %204 = vmatprep.subr.mxu0 0.0
    %205 = vmatpush1.msra.mxu0 0.0
    %206 = vmatprep.mubr.f32.mxu0 0.0
    %207 = vmatmul.mubr.f32.gmra.mrb[0].mxu0 %v58
    %v208 = vpop.f32.mrb[0].mxu0
    %v209 = vadd.f32 0.0, %v208
    %v210 = vpop.f32.mrb[0].mxu0
    %211 = vmatprep.mubr.f32.mxu0 0.0
    %212 = vmatmul.mubr.f32.gmra.mrb[0].mxu0 %v61
    %v213 = vpop.f32.mrb[0].mxu0
    %v214 = vadd.f32 0.0, %v213
    %v215 = vpop.f32.mrb[0].mxu0
    %216 = vdwg.mxu0
    %v217 = vadd.f32 %v140, %v209
    %v218 = vadd.f32 %v141, %v214
    %v219 = vld [vmem:[%s4] sm:$0xff]
    %v220 = vld [vmem:[%s5] sm:$0xff]
    %v221 = vld [vmem:[%s5 + $0x8] sm:$0xf]
    %vm222 = vcmask 97280
    %v224 = vsel %vm222, %v217, 0
    %v227 = vsel %vm222, %v218, 0
    %vm229 = vcmask 1043456
    %v231 = vsel %vm229, %v221, 0
    %233 = vmatprep.subr.mxu0 0.0
    %234 = vmatpush1.msra.mxu0 %v220
    %235 = vmatprep.subr.mxu0 0.0
    %236 = vmatpush1.msra.mxu0 %v231
    %237 = vmatprep.subr.mxu0 0.0
    %238 = vmatpush1.msra.mxu0 0.0
    %239 = vmatprep.subr.mxu0 0.0
    %240 = vmatpush1.msra.mxu0 0.0
    %241 = vmatprep.subr.mxu0 0.0
    %242 = vmatpush1.msra.mxu0 0.0
    %243 = vmatprep.subr.mxu0 0.0
    %244 = vmatpush1.msra.mxu0 0.0
    %245 = vmatprep.subr.mxu0 0.0
    %246 = vmatpush1.msra.mxu0 0.0
    %247 = vmatprep.subr.mxu0 0.0
    %248 = vmatpush1.msra.mxu0 0.0
    %249 = vmatprep.subr.mxu0 0.0
    %250 = vmatpush1.msra.mxu0 0.0
    %251 = vmatprep.subr.mxu0 0.0
    %252 = vmatpush1.msra.mxu0 0.0
    %253 = vmatprep.subr.mxu0 0.0
    %254 = vmatpush1.msra.mxu0 0.0
    %255 = vmatprep.subr.mxu0 0.0
    %256 = vmatpush1.msra.mxu0 0.0
    %257 = vmatprep.subr.mxu0 0.0
    %258 = vmatpush1.msra.mxu0 0.0
    %259 = vmatprep.subr.mxu0 0.0
    %260 = vmatpush1.msra.mxu0 0.0
    %261 = vmatprep.subr.mxu0 0.0
    %262 = vmatpush1.msra.mxu0 0.0
    %263 = vmatprep.subr.mxu0 0.0
    %264 = vmatpush1.msra.mxu0 0.0
    %265 = vmatprep.subr.mxu0 0.0
    %266 = vmatpush1.msra.mxu0 0.0
    %267 = vmatprep.subr.mxu0 0.0
    %268 = vmatpush1.msra.mxu0 0.0
    %269 = vmatprep.subr.mxu0 0.0
    %270 = vmatpush1.msra.mxu0 0.0
    %271 = vmatprep.subr.mxu0 0.0
    %272 = vmatpush1.msra.mxu0 0.0
    %273 = vmatprep.subr.mxu0 0.0
    %274 = vmatpush1.msra.mxu0 0.0
    %275 = vmatprep.subr.mxu0 0.0
    %276 = vmatpush1.msra.mxu0 0.0
    %277 = vmatprep.subr.mxu0 0.0
    %278 = vmatpush1.msra.mxu0 0.0
    %279 = vmatprep.subr.mxu0 0.0
    %280 = vmatpush1.msra.mxu0 0.0
    %281 = vmatprep.subr.mxu0 0.0
    %282 = vmatpush1.msra.mxu0 0.0
    %283 = vmatprep.subr.mxu0 0.0
    %284 = vmatpush1.msra.mxu0 0.0
    %285 = vmatprep.subr.mxu0 0.0
    %286 = vmatpush1.msra.mxu0 0.0
    %287 = vmatprep.subr.mxu0 0.0
    %288 = vmatpush1.msra.mxu0 0.0
    %289 = vmatprep.subr.mxu0 0.0
    %290 = vmatpush1.msra.mxu0 0.0
    %291 = vmatprep.subr.mxu0 0.0
    %292 = vmatpush1.msra.mxu0 0.0
    %293 = vmatprep.subr.mxu0 0.0
    %294 = vmatpush1.msra.mxu0 0.0
    %295 = vmatprep.subr.mxu0 0.0
    %296 = vmatpush1.msra.mxu0 0.0
    %297 = vmatprep.mubr.f32.mxu0 0.0
    %298 = vmatmul.mubr.f32.gmra.mrb[0].mxu0 %v224
    %v299 = vpop.f32.mrb[0].mxu0
    %v300 = vadd.f32 0.0, %v299
    %v301 = vpop.f32.mrb[0].mxu0
    %302 = vmatprep.mubr.f32.mxu0 0.0
    %303 = vmatmul.mubr.f32.gmra.mrb[0].mxu0 %v227
    %v304 = vpop.f32.mrb[0].mxu0
    %v305 = vadd.f32 0.0, %v304
    %v306 = vpop.f32.mrb[0].mxu0
    %307 = vdwg.mxu0
    %vm308 = vcmask 64512
    %v310 = vsel %vm308, %v138, 0
    %v313 = vsel %vm308, %v139, 0
    %315 = vmatprep.subr.mxu0 0.0
    %316 = vmatpush1.msra.mxu0 %v219
    %317 = vmatprep.subr.mxu0 0.0
    %318 = vmatpush1.msra.mxu0 0.0
    %319 = vmatprep.subr.mxu0 0.0
    %320 = vmatpush1.msra.mxu0 0.0
    %321 = vmatprep.subr.mxu0 0.0
    %322 = vmatpush1.msra.mxu0 0.0
    %323 = vmatprep.subr.mxu0 0.0
    %324 = vmatpush1.msra.mxu0 0.0
    %325 = vmatprep.subr.mxu0 0.0
    %326 = vmatpush1.msra.mxu0 0.0
    %327 = vmatprep.subr.mxu0 0.0
    %328 = vmatpush1.msra.mxu0 0.0
    %329 = vmatprep.subr.mxu0 0.0
    %330 = vmatpush1.msra.mxu0 0.0
    %331 = vmatprep.subr.mxu0 0.0
    %332 = vmatpush1.msra.mxu0 0.0
    %333 = vmatprep.subr.mxu0 0.0
    %334 = vmatpush1.msra.mxu0 0.0
    %335 = vmatprep.subr.mxu0 0.0
    %336 = vmatpush1.msra.mxu0 0.0
    %337 = vmatprep.subr.mxu0 0.0
    %338 = vmatpush1.msra.mxu0 0.0
    %339 = vmatprep.subr.mxu0 0.0
    %340 = vmatpush1.msra.mxu0 0.0
    %341 = vmatprep.subr.mxu0 0.0
    %342 = vmatpush1.msra.mxu0 0.0
    %343 = vmatprep.subr.mxu0 0.0
    %344 = vmatpush1.msra.mxu0 0.0
    %345 = vmatprep.subr.mxu0 0.0
    %346 = vmatpush1.msra.mxu0 0.0
    %347 = vmatprep.subr.mxu0 0.0
    %348 = vmatpush1.msra.mxu0 0.0
    %349 = vmatprep.subr.mxu0 0.0
    %350 = vmatpush1.msra.mxu0 0.0
    %351 = vmatprep.subr.mxu0 0.0
    %352 = vmatpush1.msra.mxu0 0.0
    %353 = vmatprep.subr.mxu0 0.0
    %354 = vmatpush1.msra.mxu0 0.0
    %355 = vmatprep.subr.mxu0 0.0
    %356 = vmatpush1.msra.mxu0 0.0
    %357 = vmatprep.subr.mxu0 0.0
    %358 = vmatpush1.msra.mxu0 0.0
    %359 = vmatprep.subr.mxu0 0.0
    %360 = vmatpush1.msra.mxu0 0.0
    %361 = vmatprep.subr.mxu0 0.0
    %362 = vmatpush1.msra.mxu0 0.0
    %363 = vmatprep.subr.mxu0 0.0
    %364 = vmatpush1.msra.mxu0 0.0
    %365 = vmatprep.subr.mxu0 0.0
    %366 = vmatpush1.msra.mxu0 0.0
    %367 = vmatprep.subr.mxu0 0.0
    %368 = vmatpush1.msra.mxu0 0.0
    %369 = vmatprep.subr.mxu0 0.0
    %370 = vmatpush1.msra.mxu0 0.0
    %371 = vmatprep.subr.mxu0 0.0
    %372 = vmatpush1.msra.mxu0 0.0
    %373 = vmatprep.subr.mxu0 0.0
    %374 = vmatpush1.msra.mxu0 0.0
    %375 = vmatprep.subr.mxu0 0.0
    %376 = vmatpush1.msra.mxu0 0.0
    %377 = vmatprep.subr.mxu0 0.0
    %378 = vmatpush1.msra.mxu0 0.0
    %379 = vmatprep.mubr.f32.mxu0 0.0
    %380 = vmatmul.mubr.f32.gmra.mrb[0].mxu0 %v310
    %v381 = vpop.f32.mrb[0].mxu0
    %v382 = vadd.f32 %v300, %v381
    %v383 = vpop.f32.mrb[0].mxu0
    %384 = vmatprep.mubr.f32.mxu0 0.0
    %385 = vmatmul.mubr.f32.gmra.mrb[0].mxu0 %v313
    %v386 = vpop.f32.mrb[0].mxu0
    %v387 = vadd.f32 %v305, %v386
    %v388 = vpop.f32.mrb[0].mxu0
    %389 = vdwg.mxu0
    %v390 = vld [vmem:[%s6] sm:$0x1]
    %v392 = vlaneseq
    %v393 = vshrl.u32 %v392, 7
    %v394 = vsub.s32 0, %v393
    %v395 = vrot.slane %v390, %v394
    %v397 = vadd.f32 %v382, %v395
    %v398 = vadd.f32 %v387, %v395
    %v399 = vmax.f32 %v397, 0.0
    %v400 = vmax.f32 %v398, 0.0
    %s401 = sld [smem:[#allocation2 + $0x1]]
    %s402 = sadd.f32 %s401, 1.0
    %v403 = vstv %s402
    %v404 = vmul.f32 %v403, %v399
    %v405 = vmul.f32 %v403, %v400
    %406 = vmatprep.subr.mxu0 0.0
    %407 = vmatpush1.msra.mxu0 %v399
    %408 = vmatprep.subr.mxu0 0.0
    %409 = vmatpush1.msra.mxu0 %v400
    %410 = vmatprep.subr.mxu0 0.0
    %411 = vmatpush1.msra.mxu0 0.0
    %412 = vmatprep.subr.mxu0 0.0
    %413 = vmatpush1.msra.mxu0 0.0
    %414 = vmatprep.subr.mxu0 0.0
    %415 = vmatpush1.msra.mxu0 0.0
    %416 = vmatprep.subr.mxu0 0.0
    %417 = vmatpush1.msra.mxu0 0.0
    %418 = vmatprep.subr.mxu0 0.0
    %419 = vmatpush1.msra.mxu0 0.0
    %420 = vmatprep.subr.mxu0 0.0
    %421 = vmatpush1.msra.mxu0 0.0
    %422 = vmatprep.subr.mxu0 0.0
    %423 = vmatpush1.msra.mxu0 0.0
    %424 = vmatprep.subr.mxu0 0.0
    %425 = vmatpush1.msra.mxu0 0.0
    %426 = vmatprep.subr.mxu0 0.0
    %427 = vmatpush1.msra.mxu0 0.0
    %428 = vmatprep.subr.mxu0 0.0
    %429 = vmatpush1.msra.mxu0 0.0
    %430 = vmatprep.subr.mxu0 0.0
    %431 = vmatpush1.msra.mxu0 0.0
    %432 = vmatprep.subr.mxu0 0.0
    %433 = vmatpush1.msra.mxu0 0.0
    %434 = vmatprep.subr.mxu0 0.0
    %435 = vmatpush1.msra.mxu0 0.0
    %436 = vmatprep.subr.mxu0 0.0
    %437 = vmatpush1.msra.mxu0 0.0
    %438 = vmatprep.subr.mxu0 0.0
    %439 = vmatpush1.msra.mxu0 0.0
    %440 = vmatprep.subr.mxu0 0.0
    %441 = vmatpush1.msra.mxu0 0.0
    %442 = vmatprep.subr.mxu0 0.0
    %443 = vmatpush1.msra.mxu0 0.0
    %444 = vmatprep.subr.mxu0 0.0
    %445 = vmatpush1.msra.mxu0 0.0
    %446 = vmatprep.subr.mxu0 0.0
    %447 = vmatpush1.msra.mxu0 0.0
    %448 = vmatprep.subr.mxu0 0.0
    %449 = vmatpush1.msra.mxu0 0.0
    %450 = vmatprep.subr.mxu0 0.0
    %451 = vmatpush1.msra.mxu0 0.0
    %452 = vmatprep.subr.mxu0 0.0
    %453 = vmatpush1.msra.mxu0 0.0
    %454 = vmatprep.subr.mxu0 0.0
    %455 = vmatpush1.msra.mxu0 0.0
    %456 = vmatprep.subr.mxu0 0.0
    %457 = vmatpush1.msra.mxu0 0.0
    %458 = vmatprep.subr.mxu0 0.0
    %459 = vmatpush1.msra.mxu0 0.0
    %460 = vmatprep.subr.mxu0 0.0
    %461 = vmatpush1.msra.mxu0 0.0
    %462 = vmatprep.subr.mxu0 0.0
    %463 = vmatpush1.msra.mxu0 0.0
    %464 = vmatprep.subr.mxu0 0.0
    %465 = vmatpush1.msra.mxu0 0.0
    %466 = vmatprep.subr.mxu0 0.0
    %467 = vmatpush1.msra.mxu0 0.0
    %468 = vmatprep.subr.mxu0 0.0
    %469 = vmatpush1.msra.mxu0 0.0
    %470 = vmatprep.mubr.f32.mxu0 0.0
    %471 = vmatmul.mubr.f32.gmra.mrb[0].mxu0 %v58
    %v472 = vpop.f32.mrb[0].mxu0
    %v473 = vadd.f32 0.0, %v472
    %v474 = vpop.f32.mrb[0].mxu0
    %475 = vmatprep.mubr.f32.mxu0 0.0
    %476 = vmatmul.mubr.f32.gmra.mrb[0].mxu0 %v61
    %v477 = vpop.f32.mrb[0].mxu0
    %v478 = vadd.f32 0.0, %v477
    %v479 = vpop.f32.mrb[0].mxu0
    %480 = vdwg.mxu0
    %v481 = vadd.f32 %v404, %v473
    %v482 = vadd.f32 %v405, %v478
    %v483 = vld [vmem:[%s7] sm:$0xff]
    %v484 = vld [vmem:[%s7 + $0x8] sm:$0xff]
    %v485 = vld [vmem:[%s7 + $0x10] sm:$0xff]
    %v486 = vld [vmem:[%s7 + $0x18] sm:$0xff]
    %v487 = vld [vmem:[%s7 + $0x20] sm:$0xff]
    %v488 = vld [vmem:[%s7 + $0x28] sm:$0xff]
    %v489 = vld [vmem:[%s8] sm:$0x1]
    %v491 = vlaneseq
    %v492 = vshrl.u32 %v491, 7
    %v493 = vsub.s32 0, %v492
    %v494 = vrot.slane %v489, %v493
    %vm496 = vcmask 392192
    %v498 = vsel %vm496, %v481, 0
    %v501 = vsel %vm496, %v482, 0
    %503 = vmatprep.subr.mxu0 0.0
    %504 = vmatpush1.msra.mxu0 %v483
    %505 = vmatprep.subr.mxu0 0.0
    %506 = vmatpush1.msra.mxu0 %v484
    %507 = vmatprep.subr.mxu0 0.0
    %508 = vmatpush1.msra.mxu0 %v485
    %509 = vmatprep.subr.mxu0 0.0
    %510 = vmatpush1.msra.mxu0 %v486
    %511 = vmatprep.subr.mxu0 0.0
    %512 = vmatpush1.msra.mxu0 %v487
    %513 = vmatprep.subr.mxu0 0.0
    %514 = vmatpush1.msra.mxu0 %v488
    %515 = vmatprep.subr.mxu0 0.0
    %516 = vmatpush1.msra.mxu0 0.0
    %517 = vmatprep.subr.mxu0 0.0
    %518 = vmatpush1.msra.mxu0 0.0
    %519 = vmatprep.subr.mxu0 0.0
    %520 = vmatpush1.msra.mxu0 0.0
    %521 = vmatprep.subr.mxu0 0.0
    %522 = vmatpush1.msra.mxu0 0.0
    %523 = vmatprep.subr.mxu0 0.0
    %524 = vmatpush1.msra.mxu0 0.0
    %525 = vmatprep.subr.mxu0 0.0
    %526 = vmatpush1.msra.mxu0 0.0
    %527 = vmatprep.subr.mxu0 0.0
    %528 = vmatpush1.msra.mxu0 0.0
    %529 = vmatprep.subr.mxu0 0.0
    %530 = vmatpush1.msra.mxu0 0.0
    %531 = vmatprep.subr.mxu0 0.0
    %532 = vmatpush1.msra.mxu0 0.0
    %533 = vmatprep.subr.mxu0 0.0
    %534 = vmatpush1.msra.mxu0 0.0
    %535 = vmatprep.subr.mxu0 0.0
    %536 = vmatpush1.msra.mxu0 0.0
    %537 = vmatprep.subr.mxu0 0.0
    %538 = vmatpush1.msra.mxu0 0.0
    %539 = vmatprep.subr.mxu0 0.0
    %540 = vmatpush1.msra.mxu0 0.0
    %541 = vmatprep.subr.mxu0 0.0
    %542 = vmatpush1.msra.mxu0 0.0
    %543 = vmatprep.subr.mxu0 0.0
    %544 = vmatpush1.msra.mxu0 0.0
    %545 = vmatprep.subr.mxu0 0.0
    %546 = vmatpush1.msra.mxu0 0.0
    %547 = vmatprep.subr.mxu0 0.0
    %548 = vmatpush1.msra.mxu0 0.0
    %549 = vmatprep.subr.mxu0 0.0
    %550 = vmatpush1.msra.mxu0 0.0
    %551 = vmatprep.subr.mxu0 0.0
    %552 = vmatpush1.msra.mxu0 0.0
    %553 = vmatprep.subr.mxu0 0.0
    %554 = vmatpush1.msra.mxu0 0.0
    %555 = vmatprep.subr.mxu0 0.0
    %556 = vmatpush1.msra.mxu0 0.0
    %557 = vmatprep.subr.mxu0 0.0
    %558 = vmatpush1.msra.mxu0 0.0
    %559 = vmatprep.subr.mxu0 0.0
    %560 = vmatpush1.msra.mxu0 0.0
    %561 = vmatprep.subr.mxu0 0.0
    %562 = vmatpush1.msra.mxu0 0.0
    %563 = vmatprep.subr.mxu0 0.0
    %564 = vmatpush1.msra.mxu0 0.0
    %565 = vmatprep.subr.mxu0 0.0
    %566 = vmatpush1.msra.mxu0 0.0
    %567 = vmatprep.mubr.f32.mxu0 0.0
    %568 = vmatmul.mubr.f32.gmra.mrb[0].mxu0 %v498
    %v569 = vpop.f32.mrb[0].mxu0
    %v570 = vadd.f32 %v494, %v569
    %v571 = vpop.f32.mrb[0].mxu0
    %572 = vmatprep.mubr.f32.mxu0 0.0
    %573 = vmatmul.mubr.f32.gmra.mrb[0].mxu0 %v501
    %v574 = vpop.f32.mrb[0].mxu0
    %v575 = vadd.f32 %v494, %v574
    %v576 = vpop.f32.mrb[0].mxu0
    %577 = vdwg.mxu0
    %v578 = vmax.f32 %v570, 0.0
    %v579 = vmax.f32 %v575, 0.0
    %580 = vst [vmem:[%s9] sm:$0xff] %v578
    %581 = vst [vmem:[%s9 + $0x8] sm:$0xff] %v579
    // Predicated region
    $region42: #{gin_forward.1} parent=1 // pred_check
      _
    $region43: #{gin_forward.1} parent=1 // pred_check_branch
      %583 = sbr.rel (0) target = $region45
    $region44: #{gin_forward.1} parent=1 // pred_region
      _
    $region45: #{gin_forward.1} parent=1 // pred_fallthru
      _
    // Predicated region
    $region46: #{gin_forward.1} parent=1 // pred_check
      _
    $region47: #{gin_forward.1} parent=1 // pred_check_branch
      %585 = sbr.rel (0) target = $region49
    $region48: #{gin_forward.1} parent=1 // pred_region
      _
    $region49: #{gin_forward.1} parent=1 // pred_fallthru
      _
    %586 = vsyncpa [#allocation3], 1

</llo_original>
